<compile_context>
chip_gen: v5e
topology: v5e:2x2
jax: 0.10.0
libtpu: 0.0.40
codegen_flags: <defaults>
</compile_context>

<pallas_src>
import functools

import jax
import jax.numpy as jnp
from jax.experimental import pallas as pl
from jax.experimental.pallas import tpu as pltpu


_MAX_FUSED_BN_BATCH = 256      # B <= this -> BN fused into the matmul epilogue
_FUSED_ACTS = ("relu", "gelu", "tanh", "sigmoid")


# ----------------------------------------------------------------------------
# Per-generation limits
# ----------------------------------------------------------------------------
@functools.lru_cache(maxsize=1)
def _tpu_limits():
    """VMEM / tiling budgets gated on physical VMEM (v5e/v6e: 128MiB, v7x: 64MiB)."""
    vmem_phys = 64 * 1024 * 1024
    try:
        info = pltpu.get_tpu_info()
        vmem_phys = int(getattr(info, "vmem_capacity_bytes", vmem_phys))
    except Exception:
        pass
    if vmem_phys >= 96 * 1024 * 1024:          # v5e / v6e
        return {"vmem_limit": 96 * 1024 * 1024, "max_single_k": 8192, "max_tk": 2048}
    # v7x (64 MiB physical) or unknown -> conservative budget
    return {"vmem_limit": 48 * 1024 * 1024, "max_single_k": 4096, "max_tk": 1024}


def _round_up(x, m):
    return (x + m - 1) // m * m


def _pick_tn(n_pad, cap=512):
    """Largest multiple of 128 that divides n_pad and is <= cap (lane-dense,
    no ragged/masked N tiles). n_pad is already a multiple of 128."""
    k_max = max(1, min(cap, n_pad) // 128)
    for k in range(k_max, 0, -1):
        if n_pad % (128 * k) == 0:
            return 128 * k
    return 128


def _apply_act(y, activation):
    if activation is None:
        return y
    if activation == "relu":
        return jnp.maximum(y, 0.0)
    if activation == "gelu":
        return jax.nn.gelu(y)
    if activation == "tanh":
        return jnp.tanh(y)
    if activation == "sigmoid":
        return jax.nn.sigmoid(y)
    raise ValueError(f"unsupported fused activation: {activation}")


# ----------------------------------------------------------------------------
# Matmul (+bias, + fused activation) kernels
# ----------------------------------------------------------------------------
def _linear_single_k_kernel(x_ref, wt_ref, b_ref, o_ref, *, activation):
    y = jnp.dot(x_ref[...], wt_ref[...], preferred_element_type=jnp.float32)
    y = y + b_ref[...].astype(jnp.float32)
    o_ref[...] = _apply_act(y, activation).astype(o_ref.dtype)


def _linear_multi_k_kernel(x_ref, wt_ref, b_ref, o_ref, acc_ref, *, activation):
    k = pl.program_id(2)

    @pl.when(k == 0)
    def _():
        acc_ref[...] = jnp.zeros_like(acc_ref)

    acc_ref[...] += jnp.dot(x_ref[...], wt_ref[...],
                            preferred_element_type=jnp.float32)

    @pl.when(k == pl.num_programs(2) - 1)
    def _():
        y = acc_ref[...] + b_ref[...].astype(jnp.float32)
        o_ref[...] = _apply_act(y, activation).astype(o_ref.dtype)


# ----------------------------------------------------------------------------
# Matmul + BatchNorm1d (batch statistics) + fused activation in the epilogue.
# Requires the full batch in one M tile (tm == B) so the per-feature batch
# statistics are exact.  Bias is omitted: cancelled by the mean subtraction.
# ----------------------------------------------------------------------------
def _linear_bn_single_k_kernel(x_ref, wt_ref, g_ref, bt_ref, o_ref, *,
                               eps, activation):
    y = jnp.dot(x_ref[...], wt_ref[...], preferred_element_type=jnp.float32)
    mean = jnp.mean(y, axis=0, keepdims=True)
    var = jnp.mean((y - mean) ** 2, axis=0, keepdims=True)   # biased, as PyTorch
    out = (y - mean) * jax.lax.rsqrt(var + eps)
    out = out * g_ref[...].astype(jnp.float32) + bt_ref[...].astype(jnp.float32)
    o_ref[...] = _apply_act(out, activation).astype(o_ref.dtype)


def _linear_bn_multi_k_kernel(x_ref, wt_ref, g_ref, bt_ref, o_ref, acc_ref, *,
                              eps, activation):
    k = pl.program_id(1)   # grid = (N tiles, K tiles); reduction axis last

    @pl.when(k == 0)
    def _():
        acc_ref[...] = jnp.zeros_like(acc_ref)

    acc_ref[...] += jnp.dot(x_ref[...], wt_ref[...],
                            preferred_element_type=jnp.float32)

    @pl.when(k == pl.num_programs(1) - 1)
    def _():
        y = acc_ref[...]
        mean = jnp.mean(y, axis=0, keepdims=True)
        var = jnp.mean((y - mean) ** 2, axis=0, keepdims=True)
        out = (y - mean) * jax.lax.rsqrt(var + eps)
        out = out * g_ref[...].astype(jnp.float32) + bt_ref[...].astype(jnp.float32)
        o_ref[...] = _apply_act(out, activation).astype(o_ref.dtype)


# ----------------------------------------------------------------------------
# Large-batch BN fallback: batch-tiled sum/sumsq reduction + in-place normalize
# ----------------------------------------------------------------------------
def _bn_stats_kernel(y_ref, sum_ref, sq_ref, *, tb, b_total):
    b = pl.program_id(1)

    @pl.when(b == 0)
    def _():
        sum_ref[...] = jnp.zeros_like(sum_ref)
        sq_ref[...] = jnp.zeros_like(sq_ref)

    y = y_ref[...].astype(jnp.float32)
    if b_total % tb != 0:
        rows = jax.lax.broadcasted_iota(jnp.int32, y.shape, 0) + b * tb
        y = jnp.where(rows < b_total, y, 0.0)
    sum_ref[...] += jnp.sum(y, axis=0, keepdims=True)
    sq_ref[...] += jnp.sum(y * y, axis=0, keepdims=True)


def _bn_apply_kernel(y_ref, scale_ref, shift_ref, o_ref, *, activation):
    out = y_ref[...].astype(jnp.float32) * scale_ref[...] + shift_ref[...]
    o_ref[...] = _apply_act(out, activation).astype(o_ref.dtype)


# ----------------------------------------------------------------------------
# Drivers
# ----------------------------------------------------------------------------
def linear_forward(x2d, weight_t, bias2d, *, activation, tk, vmem_limit,
                   out_dtype=jnp.float32):
    """y = act(x2d @ weight_t + bias).  weight_t is (K, N), both pre-padded."""
    B, K = x2d.shape
    N = weight_t.shape[1]
    tm = min(B, 256)
    tn = _pick_tn(N)
    m_tiles = pl.cdiv(B, tm)
    n_tiles = N // tn
    # v7x megacore: guarantee >= 2 parallel steps when cheaply possible.
    if m_tiles * n_tiles == 1 and tn % 256 == 0:
        tn //= 2
        n_tiles = N // tn

    if tk is None:
        kernel = functools.partial(_linear_single_k_kernel, activation=activation)
        return pl.pallas_call(
            kernel,
            out_shape=jax.ShapeDtypeStruct((B, N), out_dtype),
            grid_spec=pltpu.PrefetchScalarGridSpec(
                num_scalar_prefetch=0,
                grid=(m_tiles, n_tiles),
                in_specs=[
                    pl.BlockSpec((tm, K), lambda i, j: (i, 0)),
                    pl.BlockSpec((K, tn), lambda i, j: (0, j)),
                    pl.BlockSpec((1, tn), lambda i, j: (0, j)),
                ],
                out_specs=pl.BlockSpec((tm, tn), lambda i, j: (i, j)),
            ),
            compiler_params=pltpu.CompilerParams(
                dimension_semantics=("parallel", "parallel"),
                vmem_limit_bytes=vmem_limit),
        )(x2d, weight_t, bias2d)

    assert K % tk == 0, "K must be pre-padded to a multiple of tk"
    kernel = functools.partial(_linear_multi_k_kernel, activation=activation)
    return pl.pallas_call(
        kernel,
        out_shape=jax.ShapeDtypeStruct((B, N), out_dtype),
        grid_spec=pltpu.PrefetchScalarGridSpec(
            num_scalar_prefetch=0,
            grid=(m_tiles, n_tiles, K // tk),
            in_specs=[
                pl.BlockSpec((tm, tk), lambda i, j, k: (i, k)),
                pl.BlockSpec((tk, tn), lambda i, j, k: (k, j)),
                pl.BlockSpec((1, tn), lambda i, j, k: (0, j)),
            ],
            out_specs=pl.BlockSpec((tm, tn), lambda i, j, k: (i, j)),
            scratch_shapes=[pltpu.VMEM((tm, tn), jnp.float32)],
        ),
        compiler_params=pltpu.CompilerParams(
            dimension_semantics=("parallel", "parallel", "arbitrary"),
            vmem_limit_bytes=vmem_limit),
    )(x2d, weight_t, bias2d)


def linear_bn_forward(x2d, weight_t, gamma2d, beta2d, *, eps, activation, tk,
                      vmem_limit, out_dtype=jnp.float32):
    """Fused y = act(BN(x2d @ weight_t)).  Requires B <= _MAX_FUSED_BN_BATCH."""
    B, K = x2d.shape
    N = weight_t.shape[1]
    tn = _pick_tn(N)
    n_tiles = N // tn
    if n_tiles == 1 and tn % 256 == 0:     # give both v7x TensorCores work
        tn //= 2
        n_tiles = N // tn

    if tk is None:
        kernel = functools.partial(_linear_bn_single_k_kernel,
                                   eps=eps, activation=activation)
        return pl.pallas_call(
            kernel,
            out_shape=jax.ShapeDtypeStruct((B, N), out_dtype),
            grid_spec=pltpu.PrefetchScalarGridSpec(
                num_scalar_prefetch=0,
                grid=(n_tiles,),
                in_specs=[
                    pl.BlockSpec((B, K), lambda j: (0, 0)),
                    pl.BlockSpec((K, tn), lambda j: (0, j)),
                    pl.BlockSpec((1, tn), lambda j: (0, j)),
                    pl.BlockSpec((1, tn), lambda j: (0, j)),
                ],
                out_specs=pl.BlockSpec((B, tn), lambda j: (0, j)),
            ),
            compiler_params=pltpu.CompilerParams(
                dimension_semantics=("parallel",),
                vmem_limit_bytes=vmem_limit),
        )(x2d, weight_t, gamma2d, beta2d)

    assert K % tk == 0, "K must be pre-padded to a multiple of tk"
    kernel = functools.partial(_linear_bn_multi_k_kernel,
                               eps=eps, activation=activation)
    return pl.pallas_call(
        kernel,
        out_shape=jax.ShapeDtypeStruct((B, N), out_dtype),
        grid_spec=pltpu.PrefetchScalarGridSpec(
            num_scalar_prefetch=0,
            grid=(n_tiles, K // tk),
            in_specs=[
                pl.BlockSpec((B, tk), lambda j, k: (0, k)),
                pl.BlockSpec((tk, tn), lambda j, k: (k, j)),
                pl.BlockSpec((1, tn), lambda j, k: (0, j)),
                pl.BlockSpec((1, tn), lambda j, k: (0, j)),
            ],
            out_specs=pl.BlockSpec((B, tn), lambda j, k: (0, j)),
            scratch_shapes=[pltpu.VMEM((B, tn), jnp.float32)],
        ),
        compiler_params=pltpu.CompilerParams(
            dimension_semantics=("parallel", "arbitrary"),
            vmem_limit_bytes=vmem_limit),
    )(x2d, weight_t, gamma2d, beta2d)


def batchnorm_act_large(y, gamma2d, beta2d, *, eps, activation, vmem_limit):
    """Batch-tiled BatchNorm1d (batch stats) + activation for large B.

    Pass 1: masked per-feature sum / sumsq reduction over batch tiles.
    Pass 2: y <- act(y * scale + shift), written in place (aliased output)."""
    B, N = y.shape
    tn = _pick_tn(N)
    tb = min(B, 256)
    b_tiles = pl.cdiv(B, tb)
    n_tiles = N // tn

    stats_kernel = functools.partial(_bn_stats_kernel, tb=tb, b_total=B)
    s, sq = pl.pallas_call(
        stats_kernel,
        out_shape=(jax.ShapeDtypeStruct((1, N), jnp.float32),
                   jax.ShapeDtypeStruct((1, N), jnp.float32)),
        grid_spec=pltpu.PrefetchScalarGridSpec(
            num_scalar_prefetch=0,
            grid=(n_tiles, b_tiles),
            in_specs=[pl.BlockSpec((tb, tn), lambda j, b: (b, j))],
            out_specs=(pl.BlockSpec((1, tn), lambda j, b: (0, j)),
                       pl.BlockSpec((1, tn), lambda j, b: (0, j))),
        ),
        compiler_params=pltpu.CompilerParams(
            dimension_semantics=("parallel", "arbitrary"),
            vmem_limit_bytes=vmem_limit),
    )(y)

    # Tiny (1, N) math stays in plain XLA.
    mean = s / B
    var = sq / B - mean * mean            # biased, as PyTorch normalizes
    scale = gamma2d * jax.lax.rsqrt(var + eps)
    shift = beta2d - mean * scale

    apply_kernel = functools.partial(_bn_apply_kernel, activation=activation)
    return pl.pallas_call(
        apply_kernel,
        out_shape=jax.ShapeDtypeStruct((B, N), y.dtype),
        grid_spec=pltpu.PrefetchScalarGridSpec(
            num_scalar_prefetch=0,
            grid=(b_tiles, n_tiles),
            in_specs=[
                pl.BlockSpec((tb, tn), lambda i, j: (i, j)),
                pl.BlockSpec((1, tn), lambda i, j: (0, j)),
                pl.BlockSpec((1, tn), lambda i, j: (0, j)),
            ],
            out_specs=pl.BlockSpec((tb, tn), lambda i, j: (i, j)),
        ),
        input_output_aliases={0: 0},      # normalize y in place (no extra HBM buffer)
        compiler_params=pltpu.CompilerParams(
            dimension_semantics=("parallel", "parallel"),
            vmem_limit_bytes=vmem_limit),
    )(y, scale, shift)


# ----------------------------------------------------------------------------
# Module-equivalent wrapper
# ----------------------------------------------------------------------------
class LinearPallas:
    """JAX/Pallas equivalent of modules/nn/linear.py::Linear (forward pass)."""

    def __init__(self, in_dim, out_dim, activation_fn=None, BN=False, *, key,
                 use_bf16=False, _force_tk=None):
        limits = _tpu_limits()
        self._vmem_limit = limits["vmem_limit"]

        kw, kb = jax.random.split(key, 2)
        bound = 1.0 / (in_dim ** 0.5)
        self.weight = jax.random.uniform(kw, (out_dim, in_dim), jnp.float32,
                                         -bound, bound)
        self.bias = jax.random.uniform(kb, (out_dim,), jnp.float32, -bound, bound)
        self.in_dim, self.out_dim = in_dim, out_dim
        self.BN = BN
        self.bn_eps = 1e-5
        if BN:
            self.gamma = jnp.ones((out_dim,), jnp.float32)
            self.beta = jnp.zeros((out_dim,), jnp.float32)
        self.activation_fn = activation_fn
        self._fused_act = (activation_fn if isinstance(activation_fn, str)
                           and activation_fn in _FUSED_ACTS else None)
        self.use_bf16 = use_bf16

        # --- one-time layout prep (transpose, pad, cast): no per-call HBM pass
        if _force_tk is not None:                       # test-only override
            self.tk = int(_force_tk)
        elif in_dim <= limits["max_single_k"]:
            self.tk = None                              # single-reduction path
        else:
            cands = sorted({c for c in (limits["max_tk"], 1024, 512, 256)
                            if c <= limits["max_tk"]}, reverse=True)
            self.tk = next((c for c in cands if in_dim % c == 0),
                           limits["max_tk"])
        self.k_pad = in_dim if self.tk is None else _round_up(in_dim, self.tk)
        self.n_pad = _round_up(out_dim, 128)            # lane-dense output

        wt = jnp.asarray(self.weight.T)                 # (in_dim, out_dim)
        if self.k_pad != in_dim or self.n_pad != out_dim:
            wt = jnp.pad(wt, ((0, self.k_pad - in_dim),
                              (0, self.n_pad - out_dim)))
        self._compute_dtype = jnp.bfloat16 if use_bf16 else jnp.float32
        self.weight_t = wt.astype(self._compute_dtype)  # stored once, padded

        pad_n = self.n_pad - out_dim
        self.bias2d = jnp.pad(self.bias, (0, pad_n)).reshape(1, self.n_pad)
        if BN:
            self.gamma2d = jnp.pad(self.gamma, (0, pad_n)).reshape(1, self.n_pad)
            self.beta2d = jnp.pad(self.beta, (0, pad_n)).reshape(1, self.n_pad)

    def __call__(self, x):
        x2d = x.reshape(x.shape[0], -1)                 # x.view(B, -1)
        B = x2d.shape[0]
        x2d = x2d.astype(self._compute_dtype)
        if self.k_pad != self.in_dim:
            x2d = jnp.pad(x2d, ((0, 0), (0, self.k_pad - self.in_dim)))

        if self.BN:
            if B <= _MAX_FUSED_BN_BATCH:
                # Fully fused matmul + BN (+act); bias omitted (cancelled by mean).
                y = linear_bn_forward(
                    x2d, self.weight_t, self.gamma2d, self.beta2d,
                    eps=self.bn_eps, activation=self._fused_act,
                    tk=self.tk, vmem_limit=self._vmem_limit)
            else:
                y = linear_forward(x2d, self.weight_t, self.bias2d,
                                   activation=None, tk=self.tk,
                                   vmem_limit=self._vmem_limit)
                y = batchnorm_act_large(y, self.gamma2d, self.beta2d,
                                        eps=self.bn_eps,
                                        activation=self._fused_act,
                                        vmem_limit=self._vmem_limit)
        else:
            y = linear_forward(x2d, self.weight_t, self.bias2d,
                               activation=self._fused_act, tk=self.tk,
                               vmem_limit=self._vmem_limit)

        if self.n_pad != self.out_dim:
            y = y[:, :self.out_dim]
        if (self.activation_fn is not None and self._fused_act is None
                and callable(self.activation_fn)):
            # TODO(synk): arbitrary activation callables run as a separate XLA op.
            y = self.activation_fn(y)
        return y


# ----------------------------------------------------------------------------
# Pure-JAX reference for verification
# ----------------------------------------------------------------------------
def _reference(mod, x):
    x2d = x.reshape(x.shape[0], -1).astype(jnp.float32)
    y = x2d @ mod.weight.T + mod.bias
    if mod.BN:
        mean = jnp.mean(y, 0, keepdims=True)
        var = jnp.mean((y - mean) ** 2, 0, keepdims=True)
        y = (y - mean) * jax.lax.rsqrt(var + mod.bn_eps) * mod.gamma + mod.beta
    if mod._fused_act is not None:
        y = _apply_act(y, mod._fused_act)
    elif callable(mod.activation_fn):
        y = mod.activation_fn(y)
    return y


if __name__ == "__main__":
    key = jax.random.PRNGKey(0)
    kx, k1, k2, k3, k4, k5, k6 = jax.random.split(key, 7)

    # (batch=8, channels=4, spatial=8x8) -> flattened in_dim = 256
    x_small = jax.random.normal(kx, (8, 4, 8, 8), jnp.float32)

    # 1. Plain Linear: single-reduction path, fused bias.
    m1 = LinearPallas(256, 128, key=k1)
    y1 = jax.block_until_ready(m1(x_small))
    assert jnp.allclose(y1, _reference(m1, x_small), atol=2e-3, rtol=2e-3)

    # 2. Linear + BatchNorm1d + ReLU, fully fused into the matmul epilogue.
    m2 = LinearPallas(256, 128, activation_fn="relu", BN=True, key=k2)
    y2 = jax.block_until_ready(m2(x_small))
    assert jnp.allclose(y2, _reference(m2, x_small), atol=2e-3, rtol=2e-3)

    # 3. out_dim not a multiple of 128 (tests N padding + slice) + fused gelu.
    m3 = LinearPallas(256, 200, activation_fn="gelu", key=k3)
    y3 = jax.block_until_ready(m3(x_small))
    assert y3.shape == (8, 200)
    assert jnp.allclose(y3, _reference(m3, x_small), atol=2e-3, rtol=2e-3)

    # 4. Forced multi-K reduction with the fused BN epilogue.
    x4 = jax.random.normal(kx, (8, 768), jnp.float32)
    m4 = LinearPallas(768, 256, activation_fn="relu", BN=True, key=k4, _force_tk=256)
    y4 = jax.block_until_ready(m4(x4))
    assert jnp.allclose(y4, _reference(m4, x4), atol=2e-3, rtol=2e-3)

    # 5. Forced multi-K with K padding (640 -> 768) on the plain-linear path.
    x5 = jax.random.normal(kx, (8, 640), jnp.float32)
    m5 = LinearPallas(640, 128, key=k5, _force_tk=256)
    y5 = jax.block_until_ready(m5(x5))
    assert jnp.allclose(y5, _reference(m5, x5), atol=2e-3, rtol=2e-3)

    # 6. Large-batch BN fallback (B > 256): batch-tiled stats + in-place apply.
    x6 = jax.random.normal(kx, (320, 128), jnp.float32)
    m6 = LinearPallas(128, 128, activation_fn="relu", BN=True, key=k6)
    y6 = jax.block_until_ready(m6(x6))
    assert jnp.allclose(y6, _reference(m6, x6), atol=2e-3, rtol=2e-3)

    # 7. bf16 weight/activation path (looser tolerance; f32 accumulation).
    m7 = LinearPallas(256, 128, activation_fn="relu", key=k1, use_bf16=True)
    y7 = jax.block_until_ready(m7(x_small))
    assert jnp.allclose(y7, _reference(m7, x_small), atol=5e-2, rtol=5e-2)

    print("KERNEL_OK")
</pallas_src>

<mosaic_0001>
module attributes {stable_mosaic.version = 11 : i64} {
  func.func @_linear_single_k_kernel(%arg0: i32, %arg1: i32, %arg2: memref<8x256xf32, #tpu.memory_space<vmem>>, %arg3: memref<256x128xf32, #tpu.memory_space<vmem>>, %arg4: memref<1x128xf32, #tpu.memory_space<vmem>>, %arg5: memref<8x128xf32, #tpu.memory_space<vmem>>) attributes {dimension_semantics = [#tpu.dimension_semantics<parallel>, #tpu.dimension_semantics<parallel>], iteration_bounds = array<i64: 1, 1>, scalar_prefetch = 0 : i64, scratch_operands = 0 : i64, tpu.core_type = #tpu.core_type<tc>, window_params = [{transform_indices = @transform_0, window_bounds = array<i64: 8, 256>}, {transform_indices = @transform_1, window_bounds = array<i64: 256, 128>}, {transform_indices = @transform_2, window_bounds = array<i64: 1, 128>}, {transform_indices = @transform_3, window_bounds = array<i64: 8, 128>}]} {
    %c0 = arith.constant 0 : index
    %c0_0 = arith.constant 0 : index
    %0 = vector.load %arg2[%c0, %c0_0] : memref<8x256xf32, #tpu.memory_space<vmem>>, vector<8x256xf32>
    %c0_1 = arith.constant 0 : index
    %c0_2 = arith.constant 0 : index
    %1 = vector.load %arg3[%c0_1, %c0_2] : memref<256x128xf32, #tpu.memory_space<vmem>>, vector<256x128xf32>
    %cst = arith.constant dense<0.000000e+00> : vector<8x128xf32>
    %2 = tpu.matmul %0, %1, %cst {dimension_numbers = #tpu.dot_dimension_numbers<[1], [0], [0], [1], [0, 0, 1, 1], [], []>} : vector<8x256xf32>, vector<256x128xf32>, vector<8x128xf32> -> vector<8x128xf32>
    %c0_3 = arith.constant 0 : index
    %c0_4 = arith.constant 0 : index
    %3 = vector.load %arg4[%c0_3, %c0_4] : memref<1x128xf32, #tpu.memory_space<vmem>>, vector<1x128xf32>
    %4 = vector.broadcast %3 : vector<1x128xf32> to vector<8x128xf32>
    %5 = arith.addf %2, %4 : vector<8x128xf32>
    %c0_5 = arith.constant 0 : index
    %c0_6 = arith.constant 0 : index
    %6 = vector.load %arg5[%c0_5, %c0_6] : memref<8x128xf32, #tpu.memory_space<vmem>>, vector<8x128xf32>
    tpu.vector_store %arg5[%c0_5, %c0_6], %5 {strides = array<i32>} : memref<8x128xf32, #tpu.memory_space<vmem>>, vector<8x128xf32>,
    return
  }
  func.func @transform_0(%arg0: i32, %arg1: i32) -> (i32, i32) {
    %c0_i32 = arith.constant 0 : i32
    %c0_i32_0 = arith.constant 0 : i32
    return %arg0, %c0_i32 : i32, i32
  }
  func.func @transform_1(%arg0: i32, %arg1: i32) -> (i32, i32) {
    %c0_i32 = arith.constant 0 : i32
    %c0_i32_0 = arith.constant 0 : i32
    return %c0_i32, %arg1 : i32, i32
  }
  func.func @transform_2(%arg0: i32, %arg1: i32) -> (i32, i32) {
    %c0_i32 = arith.constant 0 : i32
    %c0_i32_0 = arith.constant 0 : i32
    return %c0_i32, %arg1 : i32, i32
  }
  func.func @transform_3(%arg0: i32, %arg1: i32) -> (i32, i32) {
    %c0_i32 = arith.constant 0 : i32
    return %arg0, %arg1 : i32, i32
  }
}

</mosaic_0001>

<llo_original>
// kernel: tpu_custom_call.1
$region0: #{tpu_custom_call.1}
  #allocation0 [shape = 'u32[]', space=smem, size = 0x4, offset = 0x4, fixed_abs, tag = 'smem constant byte address 0x4 - core index']
  #allocation1 [shape = 'u32[72,128]{1,0:T(1,128)}', space=vmem, size = 0x9000, scoped, tag = 'internal scratch']
  %s0 = inlined_call_operand.hbm [shape: f32[8,256], index: 0, kind: input, shape index: {}]
  %s1 = inlined_call_operand.hbm [shape: f32[256,128], index: 1, kind: input, shape index: {}]
  %s2 = inlined_call_operand.vmem [shape: f32[1,128], index: 2, kind: input, shape index: {}]
  %s3 = inlined_call_operand.hbm [shape: f32[8,128], index: 3, kind: output, shape index: {}]
  %s4 = sld [smem:[#allocation0]]
  $region30: #{tpu_custom_call.1} parent=0
    _
  %s6 = ssub.s32 1, %s4
  %s7 = scalar_select 0, %s6, %s4
  $region1: #{tpu_custom_call.1} parent=0
    #allocation2 [shape = 'u8[8192]{0}', space=vmem, size = 0x2000, scoped, tag = 'input window, operand 0, single buffered']
    #allocation3 [shape = 's32[1]{0}', space=sflag, size = 0x4, scoped, tag = 'scoped memory for tpu_custom_call.1']
    #allocation4 [shape = 's32[1]{0}', space=sflag, size = 0x4, scoped, tag = 'scoped memory for tpu_custom_call.1']
    #allocation5 [shape = 'u8[131072]{0}', space=vmem, size = 0x20000, scoped, tag = 'input window, operand 1, single buffered']
    #allocation6 [shape = 's32[1]{0}', space=sflag, size = 0x4, scoped, tag = 'scoped memory for tpu_custom_call.1']
    #allocation7 [shape = 'u8[4096]{0}', space=vmem, size = 0x1000, scoped, tag = 'output window, operand 0, single buffered']
    %8 = vsyncpa [#allocation3], 0
    %9 = vsyncpa [#allocation6], 0
    %10 = vsyncpa [#allocation4], 0
    // Predicated region
    $region2: #{tpu_custom_call.1} parent=1 // pred_check
      _
    $region3: #{tpu_custom_call.1} parent=1 // pred_check_branch
      %12 = sbr.rel (0) target = $region5
    $region4: #{tpu_custom_call.1} parent=1 // pred_region
      %14 = vsyncadd [#allocation3], 0
      %s16 = sshll.u32 %s0, 4
      %s17 = int_to_ptr.hbm [resolvable:$true] %s16
      %s18 = sshll.u32 [#allocation2], 4
      %s19 = int_to_ptr.vmem [resolvable:$true] %s18
      %21 = dma.hbm_to_vmem [thread:$0]  %s17, 256, %s19, [#allocation3]
    $region5: #{tpu_custom_call.1} parent=1 // pred_fallthru
      _
    // Predicated region
    $region6: #{tpu_custom_call.1} parent=1 // pred_check
      _
    $region7: #{tpu_custom_call.1} parent=1 // pred_check_branch
      %23 = sbr.rel (0) target = $region9
    $region8: #{tpu_custom_call.1} parent=1 // pred_region
      %25 = vsyncadd [#allocation6], 0
      %s26 = sshll.u32 %s1, 4
      %s27 = int_to_ptr.hbm [resolvable:$true] %s26
      %s28 = sshll.u32 [#allocation5], 4
      %s29 = int_to_ptr.vmem [resolvable:$true] %s28
      %34 = dma.hbm_to_vmem [thread:$0]  %s27, 4096, %s29, [#allocation6], 128, 128, 8
    $region9: #{tpu_custom_call.1} parent=1 // pred_fallthru
      _
    // Predicated region
    $region10: #{tpu_custom_call.1} parent=1 // pred_check
      _
    $region11: #{tpu_custom_call.1} parent=1 // pred_check_branch
      %36 = sbr.rel (0) target = $region13
    $region12: #{tpu_custom_call.1} parent=1 // pred_region
      _
    $region13: #{tpu_custom_call.1} parent=1 // pred_fallthru
      _
    // Predicated region
    $region14: #{tpu_custom_call.1} parent=1 // pred_check
      _
    $region15: #{tpu_custom_call.1} parent=1 // pred_check_branch
      %38 = sbr.rel (0) target = $region17
    $region16: #{tpu_custom_call.1} parent=1 // pred_region
      %40 = dma.done [#allocation3], 256
    $region17: #{tpu_custom_call.1} parent=1 // pred_fallthru
      _
    // Predicated region
    $region18: #{tpu_custom_call.1} parent=1 // pred_check
      _
    $region19: #{tpu_custom_call.1} parent=1 // pred_check_branch
      %42 = sbr.rel (0) target = $region21
    $region20: #{tpu_custom_call.1} parent=1 // pred_region
      %44 = dma.done [#allocation6], 4096
    $region21: #{tpu_custom_call.1} parent=1 // pred_fallthru
      _
    %v45 = vld [vmem:[#allocation2] sm:$0xff]
    %v46 = vld [vmem:[#allocation2 + $0x8] sm:$0xff]
    %v47 = vld [vmem:[#allocation5] sm:$0xff]
    %v48 = vld [vmem:[#allocation5 + $0x8] sm:$0xff]
    %v49 = vld [vmem:[#allocation5 + $0x10] sm:$0xff]
    %v50 = vld [vmem:[#allocation5 + $0x18] sm:$0xff]
    %v51 = vld [vmem:[#allocation5 + $0x20] sm:$0xff]
    %v52 = vld [vmem:[#allocation5 + $0x28] sm:$0xff]
    %v53 = vld [vmem:[#allocation5 + $0x30] sm:$0xff]
    %v54 = vld [vmem:[#allocation5 + $0x38] sm:$0xff]
    %v55 = vld [vmem:[#allocation5 + $0x40] sm:$0xff]
    %v56 = vld [vmem:[#allocation5 + $0x48] sm:$0xff]
    %v57 = vld [vmem:[#allocation5 + $0x50] sm:$0xff]
    %v58 = vld [vmem:[#allocation5 + $0x58] sm:$0xff]
    %v59 = vld [vmem:[#allocation5 + $0x60] sm:$0xff]
    %v60 = vld [vmem:[#allocation5 + $0x68] sm:$0xff]
    %v61 = vld [vmem:[#allocation5 + $0x70] sm:$0xff]
    %v62 = vld [vmem:[#allocation5 + $0x78] sm:$0xff]
    %v63 = vld [vmem:[#allocation5 + $0x80] sm:$0xff]
    %v64 = vld [vmem:[#allocation5 + $0x88] sm:$0xff]
    %v65 = vld [vmem:[#allocation5 + $0x90] sm:$0xff]
    %v66 = vld [vmem:[#allocation5 + $0x98] sm:$0xff]
    %v67 = vld [vmem:[#allocation5 + $0xa0] sm:$0xff]
    %v68 = vld [vmem:[#allocation5 + $0xa8] sm:$0xff]
    %v69 = vld [vmem:[#allocation5 + $0xb0] sm:$0xff]
    %v70 = vld [vmem:[#allocation5 + $0xb8] sm:$0xff]
    %v71 = vld [vmem:[#allocation5 + $0xc0] sm:$0xff]
    %v72 = vld [vmem:[#allocation5 + $0xc8] sm:$0xff]
    %v73 = vld [vmem:[#allocation5 + $0xd0] sm:$0xff]
    %v74 = vld [vmem:[#allocation5 + $0xd8] sm:$0xff]
    %v75 = vld [vmem:[#allocation5 + $0xe0] sm:$0xff]
    %v76 = vld [vmem:[#allocation5 + $0xe8] sm:$0xff]
    %v77 = vld [vmem:[#allocation5 + $0xf0] sm:$0xff]
    %v78 = vld [vmem:[#allocation5 + $0xf8] sm:$0xff]
    %v79 = vld [vmem:[%s2] sm:$0x1]
    %v81 = vperm.slane %v79, 0
    %83 = vmatpush.msra.mxu0 %v62
    %84 = vmatpush.msra.mxu0 %v61
    %85 = vmatpush.msra.mxu0 %v60
    %86 = vmatpush.msra.mxu0 %v59
    %87 = vmatpush.msra.mxu0 %v58
    %88 = vmatpush.msra.mxu0 %v57
    %89 = vmatpush.msra.mxu0 %v56
    %90 = vmatpush.msra.mxu0 %v55
    %91 = vmatpush.msra.mxu0 %v54
    %92 = vmatpush.msra.mxu0 %v53
    %93 = vmatpush.msra.mxu0 %v52
    %94 = vmatpush.msra.mxu0 %v51
    %95 = vmatpush.msra.mxu0 %v50
    %96 = vmatpush.msra.mxu0 %v49
    %97 = vmatpush.msra.mxu0 %v48
    %98 = vmatpush.msra.mxu0 %v47
    %99 = vmatmul.f32.gmra.mxu0 %v45
    %v100 = vpop.f32.mrf.mxu0
    %v101 = vadd.f32 %v81, %v100
    %102 = vdwg.mxu0
    %103 = vmatpush.msra.mxu0 %v78
    %104 = vmatpush.msra.mxu0 %v77
    %105 = vmatpush.msra.mxu0 %v76
    %106 = vmatpush.msra.mxu0 %v75
    %107 = vmatpush.msra.mxu0 %v74
    %108 = vmatpush.msra.mxu0 %v73
    %109 = vmatpush.msra.mxu0 %v72
    %110 = vmatpush.msra.mxu0 %v71
    %111 = vmatpush.msra.mxu0 %v70
    %112 = vmatpush.msra.mxu0 %v69
    %113 = vmatpush.msra.mxu0 %v68
    %114 = vmatpush.msra.mxu0 %v67
    %115 = vmatpush.msra.mxu0 %v66
    %116 = vmatpush.msra.mxu0 %v65
    %117 = vmatpush.msra.mxu0 %v64
    %118 = vmatpush.msra.mxu0 %v63
    %119 = vmatmul.f32.gmra.mxu0 %v46
    %v120 = vpop.f32.mrf.mxu0
    %v121 = vadd.f32 %v101, %v120
    %122 = vdwg.mxu0
    %123 = vst [vmem:[#allocation7] sm:$0xff] %v121
    // Predicated region
    $region22: #{tpu_custom_call.1} parent=1 // pred_check
      _
    $region23: #{tpu_custom_call.1} parent=1 // pred_check_branch
      %125 = sbr.rel (0) target = $region25
    $region24: #{tpu_custom_call.1} parent=1 // pred_region
      %127 = vsyncadd [#allocation4], 0
      %s129 = sshll.u32 [#allocation7], 4
      %s130 = int_to_ptr.vmem [resolvable:$true] %s129
      %s131 = sshll.u32 %s3, 4
      %s132 = int_to_ptr.hbm [resolvable:$true] %s131
      %134 = dma.vmem_to_hbm [thread:$0]  %s130, 128, %s132, [#allocation4]
    $region25: #{tpu_custom_call.1} parent=1 // pred_fallthru
      _
    // Predicated region
    $region26: #{tpu_custom_call.1} parent=1 // pred_check
      _
    $region27: #{tpu_custom_call.1} parent=1 // pred_check_branch
      %136 = sbr.rel (0) target = $region29
    $region28: #{tpu_custom_call.1} parent=1 // pred_region
      %138 = dma.done [#allocation4], 128
    $region29: #{tpu_custom_call.1} parent=1 // pred_fallthru
      _
    %139 = vsyncpa [#allocation3], 1
    %140 = vsyncpa [#allocation6], 1
    %141 = vsyncpa [#allocation4], 1

</llo_original>
